<compile_context>
chip_gen: v6e
topology: v6e:2x2x1
jax: 0.10.0
libtpu: 0.0.40
codegen_flags: <defaults>
</compile_context>

<pallas_src>
import jax
import jax.numpy as jnp
import numpy as np
from jax.experimental import pallas as pl
from jax.experimental.pallas import tpu as pltpu


def _hswish(x):
    return x * jnp.clip(x + 3.0, 0.0, 6.0) * (1.0 / 6.0)


def _hsigmoid(x):
    return jnp.clip(x + 3.0, 0.0, 6.0) * (1.0 / 6.0)


def _derive_vmem_limit(in_block_bytes, out_block_bytes, scratch_bytes):
    """VMEM budget from actual block sizes: every pipelined block is double-buffered,
    plus scratch, plus headroom for Mosaic-internal scratch."""
    est = 2 * (sum(in_block_bytes) + out_block_bytes) + scratch_bytes
    est = int(est * 1.25) + (2 << 20)
    # Stay comfortably under v7x's 64 MiB physical VMEM per TensorCore.
    # TODO(synk): if est exceeds the cap (very large H*W), fall back to an inner HW-tile
    #             pipeline (pltpu.emit_pipeline) instead of whole-image blocks.
    return max(16 << 20, min(est, 48 << 20))


def _make_fused_kernel(hw_true, hw_pad, use_residual):
    inv_hw = 1.0 / float(hw_true)

    def kernel(x_ref, w1_ref, b1_ref, dws_ref, dwb_ref,
               wse1_ref, bse1_ref, wse2_ref, bse2_ref,
               w3_ref, b3_ref, o_ref, h_scr):
        x = x_ref[...]                                                     # (Cin, HWp) f32

        # expand 1x1 conv (folded BN) + hard-swish; bf16 MXU operands, f32 accumulation
        h = jnp.dot(w1_ref[...], x.astype(jnp.bfloat16),
                    preferred_element_type=jnp.float32)                    # (E, HWp) f32
        h = _hswish(h + b1_ref[...])
        # depthwise 1x1 conv (groups=E) + folded BN -> per-channel affine (f32 VPU)
        h = h * dws_ref[...] + dwb_ref[...]
        h_scr[...] = h                                                     # keep resident

        # --- Squeeze-and-Excite: global average pool over the TRUE HW lanes only.
        # Padded lanes hold hswish(b1)*dws+dwb != 0, so mask them out of the pool.
        if hw_pad != hw_true:
            lane = jax.lax.broadcasted_iota(jnp.int32, h.shape, 1)
            h_pool = jnp.where(lane < hw_true, h, 0.0)
        else:
            h_pool = h
        mean = jnp.sum(h_pool, axis=1, keepdims=True) * inv_hw             # (E, 1) f32

        # tiny SE FCs in-kernel (f32): FC -> ReLU -> FC -> hard-sigmoid
        se = jnp.dot(wse1_ref[...], mean,
                     preferred_element_type=jnp.float32) + bse1_ref[...]   # (Er, 1)
        se = jnp.maximum(se, 0.0)
        s = _hsigmoid(jnp.dot(wse2_ref[...], se,
                              preferred_element_type=jnp.float32) + bse2_ref[...])  # (E, 1)

        # SE channel scale + hard-swish on the resident activation
        g = _hswish(h_scr[...] * s)                                         # (E, HWp) f32

        # project 1x1 conv (folded BN), linear bottleneck; bf16 operands, f32 accumulate
        y = jnp.dot(w3_ref[...], g.astype(jnp.bfloat16),
                    preferred_element_type=jnp.float32) + b3_ref[...]       # (Cout, HWp)

        if use_residual:
            y = y + x   # exact f32 residual (stride==1, Cin==Cout)

        o_ref[...] = y.astype(o_ref.dtype)

    return kernel


def up_inner_forward(x_nchw, params, out_dtype=None):
    N, Cin, H, W = x_nchw.shape
    HW = H * W
    w1, b1, dws, dwb, wse1, bse1, wse2, bse2, w3, b3 = params
    E = w1.shape[0]
    Er = wse1.shape[0]
    Cout = w3.shape[0]
    # stride == 1 and kernel_size == 1 for this block; residual iff channels match.
    use_residual = (Cin == Cout)
    if out_dtype is None:
        out_dtype = x_nchw.dtype   # module semantics; pass jnp.bfloat16 to halve write bytes

    # Free reshape only (HW becomes the lane axis); pad HW to a lane-dense multiple of 128.
    HWp = ((HW + 127) // 128) * 128
    x = x_nchw.reshape(N, Cin, HW)
    if HWp != HW:
        x = jnp.pad(x, ((0, 0), (0, 0), (0, HWp - HW)))

    # Only the two big matmul weights are shipped as bf16 (tiny one-time casts); x stays f32.
    w1_bf = w1.astype(jnp.bfloat16)
    w3_bf = w3.astype(jnp.bfloat16)

    out_itemsize = jnp.dtype(out_dtype).itemsize
    in_block_bytes = [
        Cin * HWp * 4,                      # x image tile (f32)
        E * Cin * 2, E * 4, E * 4, E * 4,   # W1 (bf16), b1, dws, dwb
        Er * E * 4, Er * 4,                 # SE FC1
        E * Er * 4, E * 4,                  # SE FC2
        Cout * E * 2, Cout * 4,             # W3 (bf16), b3
    ]
    out_block_bytes = Cout * HWp * out_itemsize
    scratch_bytes = E * HWp * 4
    vmem_limit = _derive_vmem_limit(in_block_bytes, out_block_bytes, scratch_bytes)

    def const(shape):
        return pl.BlockSpec(shape, lambda n: (0, 0))

    out = pl.pallas_call(
        _make_fused_kernel(HW, HWp, use_residual),
        out_shape=jax.ShapeDtypeStruct((N, Cout, HWp), out_dtype),
        grid_spec=pltpu.PrefetchScalarGridSpec(
            num_scalar_prefetch=0,
            grid=(N,),
            in_specs=[
                pl.BlockSpec((None, Cin, HWp), lambda n: (n, 0, 0)),   # x (f32)
                const((E, Cin)),      # W1 (bf16)
                const((E, 1)),        # b1
                const((E, 1)),        # depthwise scale
                const((E, 1)),        # depthwise bias
                const((Er, E)),       # SE FC1 weight
                const((Er, 1)),       # SE FC1 bias
                const((E, Er)),       # SE FC2 weight
                const((E, 1)),        # SE FC2 bias
                const((Cout, E)),     # W3 (bf16)
                const((Cout, 1)),     # b3
            ],
            out_specs=pl.BlockSpec((None, Cout, HWp), lambda n: (n, 0, 0)),
            scratch_shapes=[pltpu.VMEM((E, HWp), jnp.float32)],       # resident h
        ),
        compiler_params=pltpu.CompilerParams(
            dimension_semantics=("parallel",),   # images shard across cores on v7x
            vmem_limit_bytes=vmem_limit),
    )(x, w1_bf, b1, dws, dwb, wse1, bse1, wse2, bse2, w3_bf, b3)

    if HWp != HW:
        out = out[:, :, :HW]
    return out.reshape(N, Cout, H, W)


def init_params(key, ch_in, ch_out):
    """Deterministic synthetic weights; BatchNorms folded (inference).  Matmul weights are
    stored in the (out_ch, in_ch) orientation so HW stays the lane axis inside the kernel;
    SE FC weights are stored so the tiny in-kernel dots take the (E,1) pooled column."""
    E = 3 * ch_out
    Er = max(E // 4, 1)
    eps = 1e-5
    keys = jax.random.split(key, 11)

    def bn(k, c):
        k1, k2, k3, k4 = jax.random.split(k, 4)
        gamma = 1.0 + 0.1 * jax.random.normal(k1, (c,))
        beta = 0.1 * jax.random.normal(k2, (c,))
        mean = 0.1 * jax.random.normal(k3, (c,))
        var = 1.0 + 0.1 * jax.random.uniform(k4, (c,))
        return gamma, beta, mean, var

    # expand 1x1 conv (no bias) + BN -> (E, Cin) weight, (E, 1) bias
    w1 = 0.1 * jax.random.normal(keys[0], (E, ch_in))
    g, b, m, v = bn(keys[1], E)
    s = g / jnp.sqrt(v + eps)
    w1f = w1 * s[:, None]
    b1f = (b - m * s)[:, None]

    # depthwise 1x1 conv (per-channel scalar weight + bias) + BN -> per-channel affine
    dw_w = 1.0 + 0.1 * jax.random.normal(keys[2], (E,))
    dw_b = 0.1 * jax.random.normal(keys[3], (E,))
    g, b, m, v = bn(keys[4], E)
    s = g / jnp.sqrt(v + eps)
    dws = (dw_w * s)[:, None]
    dwb = (b + (dw_b - m) * s)[:, None]

    # squeeze-and-excite FCs: (Er, E) @ (E, 1) -> (Er, 1); (E, Er) @ (Er, 1) -> (E, 1)
    wse1 = 0.1 * jax.random.normal(keys[5], (Er, E))
    bse1 = 0.1 * jax.random.normal(keys[6], (Er,))[:, None]
    wse2 = 0.1 * jax.random.normal(keys[7], (E, Er))
    bse2 = 0.1 * jax.random.normal(keys[8], (E,))[:, None]

    # project 1x1 conv (no bias) + BN -> (Cout, E) weight, (Cout, 1) bias
    w3 = 0.1 * jax.random.normal(keys[9], (ch_out, E))
    g, b, m, v = bn(keys[10], ch_out)
    s = g / jnp.sqrt(v + eps)
    w3f = w3 * s[:, None]
    b3f = (b - m * s)[:, None]

    return tuple(p.astype(jnp.float32) for p in
                 (w1f, b1f, dws, dwb, wse1, bse1, wse2, bse2, w3f, b3f))


def reference(x_nchw, params):
    """Pure-JAX reference mirroring the kernel numerics (bf16-rounded matmul operands,
    f32 accumulation, f32 elementwise, exact f32 residual)."""
    N, Cin, H, W = x_nchw.shape
    HW = H * W
    w1, b1, dws, dwb, wse1, bse1, wse2, bse2, w3, b3 = params
    Cout = w3.shape[0]
    hp = jax.lax.Precision.HIGHEST

    x = x_nchw.reshape(N, Cin, HW)
    xb = x.astype(jnp.bfloat16).astype(jnp.float32)
    w1f = w1.astype(jnp.bfloat16).astype(jnp.float32)
    w3f = w3.astype(jnp.bfloat16).astype(jnp.float32)

    h = jnp.einsum("ec,ncs->nes", w1f, xb, precision=hp) + b1[None]
    h = _hswish(h)
    h = h * dws[None] + dwb[None]

    mean = jnp.mean(h, axis=2, keepdims=True)                               # (N, E, 1)
    se = jnp.maximum(jnp.einsum("re,nes->nrs", wse1, mean, precision=hp) + bse1[None], 0.0)
    s = _hsigmoid(jnp.einsum("er,nrs->nes", wse2, se, precision=hp) + bse2[None])

    g = _hswish(h * s)
    gb = g.astype(jnp.bfloat16).astype(jnp.float32)
    y = jnp.einsum("oe,nes->nos", w3f, gb, precision=hp) + b3[None]

    if Cin == Cout:
        y = y + x
    return y.reshape(N, Cout, H, W)


if __name__ == "__main__":
    key = jax.random.PRNGKey(0)
    kx, kp = jax.random.split(key)

    N, ch_in, ch_out, H, W = 2, 8, 8, 16, 16   # ch_in == ch_out -> residual path exercised
    x = jax.random.normal(kx, (N, ch_in, H, W), dtype=jnp.float32)
    params = init_params(kp, ch_in, ch_out)

    y = jax.jit(up_inner_forward)(x, params)
    jax.block_until_ready(y)

    y_ref = reference(x, params)
    np.testing.assert_allclose(np.asarray(y), np.asarray(y_ref), rtol=2e-3, atol=2e-3)

    assert y.shape == (N, ch_out, H, W)
    print("KERNEL_OK")
</pallas_src>

<mosaic_0001>
module attributes {stable_mosaic.version = 11 : i64} {
  func.func @kernel(%arg0: i32, %arg1: memref<1x8x256xf32, #tpu.memory_space<vmem>>, %arg2: memref<24x8xbf16, #tpu.memory_space<vmem>>, %arg3: memref<24x1xf32, #tpu.memory_space<vmem>>, %arg4: memref<24x1xf32, #tpu.memory_space<vmem>>, %arg5: memref<24x1xf32, #tpu.memory_space<vmem>>, %arg6: memref<6x24xf32, #tpu.memory_space<vmem>>, %arg7: memref<6x1xf32, #tpu.memory_space<vmem>>, %arg8: memref<24x6xf32, #tpu.memory_space<vmem>>, %arg9: memref<24x1xf32, #tpu.memory_space<vmem>>, %arg10: memref<8x24xbf16, #tpu.memory_space<vmem>>, %arg11: memref<8x1xf32, #tpu.memory_space<vmem>>, %arg12: memref<1x8x256xf32, #tpu.memory_space<vmem>>, %arg13: memref<24x256xf32, #tpu.memory_space<vmem>>) attributes {dimension_semantics = [#tpu.dimension_semantics<parallel>], iteration_bounds = array<i64: 2>, scalar_prefetch = 0 : i64, scratch_operands = 1 : i64, tpu.core_type = #tpu.core_type<tc>, window_params = [{transform_indices = @transform_0, window_bounds = array<i64: 1, 8, 256>}, {pipeline_mode = #tpu.pipeline_mode<synchronous>, transform_indices = @transform_1, window_bounds = array<i64: 24, 8>}, {pipeline_mode = #tpu.pipeline_mode<synchronous>, transform_indices = @transform_2, window_bounds = array<i64: 24, 1>}, {pipeline_mode = #tpu.pipeline_mode<synchronous>, transform_indices = @transform_3, window_bounds = array<i64: 24, 1>}, {pipeline_mode = #tpu.pipeline_mode<synchronous>, transform_indices = @transform_4, window_bounds = array<i64: 24, 1>}, {pipeline_mode = #tpu.pipeline_mode<synchronous>, transform_indices = @transform_5, window_bounds = array<i64: 6, 24>}, {pipeline_mode = #tpu.pipeline_mode<synchronous>, transform_indices = @transform_6, window_bounds = array<i64: 6, 1>}, {pipeline_mode = #tpu.pipeline_mode<synchronous>, transform_indices = @transform_7, window_bounds = array<i64: 24, 6>}, {pipeline_mode = #tpu.pipeline_mode<synchronous>, transform_indices = @transform_8, window_bounds = array<i64: 24, 1>}, {pipeline_mode = #tpu.pipeline_mode<synchronous>, transform_indices = @transform_9, window_bounds = array<i64: 8, 24>}, {pipeline_mode = #tpu.pipeline_mode<synchronous>, transform_indices = @transform_10, window_bounds = array<i64: 8, 1>}, {transform_indices = @transform_11, window_bounds = array<i64: 1, 8, 256>}]} {
    %c0 = arith.constant 0 : index
    %c0_0 = arith.constant 0 : index
    %c0_1 = arith.constant 0 : index
    %0 = vector.load %arg1[%c0, %c0_0, %c0_1] : memref<1x8x256xf32, #tpu.memory_space<vmem>>, vector<1x8x256xf32>
    %1 = vector.shape_cast %0 : vector<1x8x256xf32> to vector<8x256xf32>
    %c0_2 = arith.constant 0 : index
    %c0_3 = arith.constant 0 : index
    %2 = vector.load %arg2[%c0_2, %c0_3] : memref<24x8xbf16, #tpu.memory_space<vmem>>, vector<24x8xbf16>
    %3 = arith.truncf %1 : vector<8x256xf32> to vector<8x256xbf16>
    %cst = arith.constant dense<0.000000e+00> : vector<24x256xf32>
    %4 = tpu.matmul %2, %3, %cst {dimension_numbers = #tpu.dot_dimension_numbers<[1], [0], [0], [1], [0, 0, 1, 1], [], []>} : vector<24x8xbf16>, vector<8x256xbf16>, vector<24x256xf32> -> vector<24x256xf32>
    %c0_4 = arith.constant 0 : index
    %c0_5 = arith.constant 0 : index
    %5 = vector.load %arg3[%c0_4, %c0_5] : memref<24x1xf32, #tpu.memory_space<vmem>>, vector<24x1xf32>
    %6 = vector.broadcast %5 : vector<24x1xf32> to vector<24x256xf32>
    %7 = arith.addf %4, %6 : vector<24x256xf32>
    %cst_6 = arith.constant 3.000000e+00 : f32
    %8 = vector.broadcast %cst_6 : f32 to vector<24x256xf32>
    %9 = arith.addf %7, %8 : vector<24x256xf32>
    %cst_7 = arith.constant 0.000000e+00 : f32
    %cst_8 = arith.constant 6.000000e+00 : f32
    %10 = vector.broadcast %cst_7 : f32 to vector<24x256xf32>
    %11 = arith.maximumf %10, %9 : vector<24x256xf32>
    %12 = vector.broadcast %cst_8 : f32 to vector<24x256xf32>
    %13 = arith.minimumf %12, %11 : vector<24x256xf32>
    %14 = arith.mulf %7, %13 : vector<24x256xf32>
    %cst_9 = arith.constant 0.166666672 : f32
    %15 = vector.broadcast %cst_9 : f32 to vector<24x256xf32>
    %16 = arith.mulf %14, %15 : vector<24x256xf32>
    %c0_10 = arith.constant 0 : index
    %c0_11 = arith.constant 0 : index
    %17 = vector.load %arg4[%c0_10, %c0_11] : memref<24x1xf32, #tpu.memory_space<vmem>>, vector<24x1xf32>
    %18 = vector.broadcast %17 : vector<24x1xf32> to vector<24x256xf32>
    %19 = arith.mulf %16, %18 : vector<24x256xf32>
    %c0_12 = arith.constant 0 : index
    %c0_13 = arith.constant 0 : index
    %20 = vector.load %arg5[%c0_12, %c0_13] : memref<24x1xf32, #tpu.memory_space<vmem>>, vector<24x1xf32>
    %21 = vector.broadcast %20 : vector<24x1xf32> to vector<24x256xf32>
    %22 = arith.addf %19, %21 : vector<24x256xf32>
    %c0_14 = arith.constant 0 : index
    %c0_15 = arith.constant 0 : index
    %23 = vector.load %arg13[%c0_14, %c0_15] : memref<24x256xf32, #tpu.memory_space<vmem>>, vector<24x256xf32>
    tpu.vector_store %arg13[%c0_14, %c0_15], %22 {strides = array<i32>} : memref<24x256xf32, #tpu.memory_space<vmem>>, vector<24x256xf32>,
    %cst_16 = arith.constant dense<0.000000e+00> : vector<24xf32>
    %24 = vector.multi_reduction <add>, %22, %cst_16 [1] : vector<24x256xf32> to vector<24xf32>
    %25 = vector.shape_cast %24 : vector<24xf32> to vector<24x1xf32>
    %cst_17 = arith.constant 3.906250e-03 : f32
    %26 = vector.broadcast %cst_17 : f32 to vector<24x1xf32>
    %27 = arith.mulf %25, %26 : vector<24x1xf32>
    %c0_18 = arith.constant 0 : index
    %c0_19 = arith.constant 0 : index
    %28 = vector.load %arg6[%c0_18, %c0_19] : memref<6x24xf32, #tpu.memory_space<vmem>>, vector<6x24xf32>
    %cst_20 = arith.constant dense<0.000000e+00> : vector<6x1xf32>
    %29 = tpu.matmul %28, %27, %cst_20 {dimension_numbers = #tpu.dot_dimension_numbers<[1], [0], [0], [1], [0, 0, 1, 1], [], []>} : vector<6x24xf32>, vector<24x1xf32>, vector<6x1xf32> -> vector<6x1xf32>
    %c0_21 = arith.constant 0 : index
    %c0_22 = arith.constant 0 : index
    %30 = vector.load %arg7[%c0_21, %c0_22] : memref<6x1xf32, #tpu.memory_space<vmem>>, vector<6x1xf32>
    %31 = arith.addf %29, %30 : vector<6x1xf32>
    %cst_23 = arith.constant 0.000000e+00 : f32
    %32 = vector.broadcast %cst_23 : f32 to vector<6x1xf32>
    %33 = arith.maximumf %31, %32 : vector<6x1xf32>
    %c0_24 = arith.constant 0 : index
    %c0_25 = arith.constant 0 : index
    %34 = vector.load %arg8[%c0_24, %c0_25] : memref<24x6xf32, #tpu.memory_space<vmem>>, vector<24x6xf32>
    %cst_26 = arith.constant dense<0.000000e+00> : vector<24x1xf32>
    %35 = tpu.matmul %34, %33, %cst_26 {dimension_numbers = #tpu.dot_dimension_numbers<[1], [0], [0], [1], [0, 0, 1, 1], [], []>} : vector<24x6xf32>, vector<6x1xf32>, vector<24x1xf32> -> vector<24x1xf32>
    %c0_27 = arith.constant 0 : index
    %c0_28 = arith.constant 0 : index
    %36 = vector.load %arg9[%c0_27, %c0_28] : memref<24x1xf32, #tpu.memory_space<vmem>>, vector<24x1xf32>
    %37 = arith.addf %35, %36 : vector<24x1xf32>
    %cst_29 = arith.constant 3.000000e+00 : f32
    %38 = vector.broadcast %cst_29 : f32 to vector<24x1xf32>
    %39 = arith.addf %37, %38 : vector<24x1xf32>
    %cst_30 = arith.constant 0.000000e+00 : f32
    %cst_31 = arith.constant 6.000000e+00 : f32
    %40 = vector.broadcast %cst_30 : f32 to vector<24x1xf32>
    %41 = arith.maximumf %40, %39 : vector<24x1xf32>
    %42 = vector.broadcast %cst_31 : f32 to vector<24x1xf32>
    %43 = arith.minimumf %42, %41 : vector<24x1xf32>
    %cst_32 = arith.constant 0.166666672 : f32
    %44 = vector.broadcast %cst_32 : f32 to vector<24x1xf32>
    %45 = arith.mulf %43, %44 : vector<24x1xf32>
    %c0_33 = arith.constant 0 : index
    %c0_34 = arith.constant 0 : index
    %46 = vector.load %arg13[%c0_33, %c0_34] : memref<24x256xf32, #tpu.memory_space<vmem>>, vector<24x256xf32>
    %47 = vector.broadcast %45 : vector<24x1xf32> to vector<24x256xf32>
    %48 = arith.mulf %46, %47 : vector<24x256xf32>
    %cst_35 = arith.constant 3.000000e+00 : f32
    %49 = vector.broadcast %cst_35 : f32 to vector<24x256xf32>
    %50 = arith.addf %48, %49 : vector<24x256xf32>
    %cst_36 = arith.constant 0.000000e+00 : f32
    %cst_37 = arith.constant 6.000000e+00 : f32
    %51 = vector.broadcast %cst_36 : f32 to vector<24x256xf32>
    %52 = arith.maximumf %51, %50 : vector<24x256xf32>
    %53 = vector.broadcast %cst_37 : f32 to vector<24x256xf32>
    %54 = arith.minimumf %53, %52 : vector<24x256xf32>
    %55 = arith.mulf %48, %54 : vector<24x256xf32>
    %cst_38 = arith.constant 0.166666672 : f32
    %56 = vector.broadcast %cst_38 : f32 to vector<24x256xf32>
    %57 = arith.mulf %55, %56 : vector<24x256xf32>
    %c0_39 = arith.constant 0 : index
    %c0_40 = arith.constant 0 : index
    %58 = vector.load %arg10[%c0_39, %c0_40] : memref<8x24xbf16, #tpu.memory_space<vmem>>, vector<8x24xbf16>
    %59 = arith.truncf %57 : vector<24x256xf32> to vector<24x256xbf16>
    %cst_41 = arith.constant dense<0.000000e+00> : vector<8x256xf32>
    %60 = tpu.matmul %58, %59, %cst_41 {dimension_numbers = #tpu.dot_dimension_numbers<[1], [0], [0], [1], [0, 0, 1, 1], [], []>} : vector<8x24xbf16>, vector<24x256xbf16>, vector<8x256xf32> -> vector<8x256xf32>
    %c0_42 = arith.constant 0 : index
    %c0_43 = arith.constant 0 : index
    %61 = vector.load %arg11[%c0_42, %c0_43] : memref<8x1xf32, #tpu.memory_space<vmem>>, vector<8x1xf32>
    %62 = vector.broadcast %61 : vector<8x1xf32> to vector<8x256xf32>
    %63 = arith.addf %60, %62 : vector<8x256xf32>
    %64 = arith.addf %63, %1 : vector<8x256xf32>
    %c0_44 = arith.constant 0 : index
    %c0_45 = arith.constant 0 : index
    %c0_46 = arith.constant 0 : index
    %65 = vector.load %arg12[%c0_44, %c0_45, %c0_46] : memref<1x8x256xf32, #tpu.memory_space<vmem>>, vector<1x8x256xf32>
    %66 = vector.shape_cast %65 : vector<1x8x256xf32> to vector<8x256xf32>
    %67 = vector.shape_cast %64 : vector<8x256xf32> to vector<1x8x256xf32>
    tpu.vector_store %arg12[%c0_44, %c0_45, %c0_46], %67 {strides = array<i32>} : memref<1x8x256xf32, #tpu.memory_space<vmem>>, vector<1x8x256xf32>,
    return
  }
  func.func @transform_0(%arg0: i32) -> (i32, i32, i32) {
    %c0_i32 = arith.constant 0 : i32
    %c0_i32_0 = arith.constant 0 : i32
    %c0_i32_1 = arith.constant 0 : i32
    return %arg0, %c0_i32, %c0_i32_0 : i32, i32, i32
  }
  func.func @transform_1(%arg0: i32) -> (i32, i32) {
    %c0_i32 = arith.constant 0 : i32
    %c0_i32_0 = arith.constant 0 : i32
    %c0_i32_1 = arith.constant 0 : i32
    return %c0_i32, %c0_i32_0 : i32, i32
  }
  func.func @transform_2(%arg0: i32) -> (i32, i32) {
    %c0_i32 = arith.constant 0 : i32
    %c0_i32_0 = arith.constant 0 : i32
    %c0_i32_1 = arith.constant 0 : i32
    return %c0_i32, %c0_i32_0 : i32, i32
  }
  func.func @transform_3(%arg0: i32) -> (i32, i32) {
    %c0_i32 = arith.constant 0 : i32
    %c0_i32_0 = arith.constant 0 : i32
    %c0_i32_1 = arith.constant 0 : i32
    return %c0_i32, %c0_i32_0 : i32, i32
  }
  func.func @transform_4(%arg0: i32) -> (i32, i32) {
    %c0_i32 = arith.constant 0 : i32
    %c0_i32_0 = arith.constant 0 : i32
    %c0_i32_1 = arith.constant 0 : i32
    return %c0_i32, %c0_i32_0 : i32, i32
  }
  func.func @transform_5(%arg0: i32) -> (i32, i32) {
    %c0_i32 = arith.constant 0 : i32
    %c0_i32_0 = arith.constant 0 : i32
    %c0_i32_1 = arith.constant 0 : i32
    return %c0_i32, %c0_i32_0 : i32, i32
  }
  func.func @transform_6(%arg0: i32) -> (i32, i32) {
    %c0_i32 = arith.constant 0 : i32
    %c0_i32_0 = arith.constant 0 : i32
    %c0_i32_1 = arith.constant 0 : i32
    return %c0_i32, %c0_i32_0 : i32, i32
  }
  func.func @transform_7(%arg0: i32) -> (i32, i32) {
    %c0_i32 = arith.constant 0 : i32
    %c0_i32_0 = arith.constant 0 : i32
    %c0_i32_1 = arith.constant 0 : i32
    return %c0_i32, %c0_i32_0 : i32, i32
  }
  func.func @transform_8(%arg0: i32) -> (i32, i32) {
    %c0_i32 = arith.constant 0 : i32
    %c0_i32_0 = arith.constant 0 : i32
    %c0_i32_1 = arith.constant 0 : i32
    return %c0_i32, %c0_i32_0 : i32, i32
  }
  func.func @transform_9(%arg0: i32) -> (i32, i32) {
    %c0_i32 = arith.constant 0 : i32
    %c0_i32_0 = arith.constant 0 : i32
    %c0_i32_1 = arith.constant 0 : i32
    return %c0_i32, %c0_i32_0 : i32, i32
  }
  func.func @transform_10(%arg0: i32) -> (i32, i32) {
    %c0_i32 = arith.constant 0 : i32
    %c0_i32_0 = arith.constant 0 : i32
    %c0_i32_1 = arith.constant 0 : i32
    return %c0_i32, %c0_i32_0 : i32, i32
  }
  func.func @transform_11(%arg0: i32) -> (i32, i32, i32) {
    %c0_i32 = arith.constant 0 : i32
    %c0_i32_0 = arith.constant 0 : i32
    %c0_i32_1 = arith.constant 0 : i32
    return %arg0, %c0_i32, %c0_i32_0 : i32, i32, i32
  }
}

</mosaic_0001>

<llo_original>
// kernel: up_inner_forward.1
$region0: #{up_inner_forward.1}
  #allocation0 [shape = 'u32[]', space=smem, size = 0x4, offset = 0x4, fixed_abs, tag = 'smem constant byte address 0x4 - core index']
  #allocation1 [shape = 'u32[144,128]{1,0:T(1,128)}', space=vmem, size = 0x12000, scoped, tag = 'internal scratch']
  #allocation2 [shape = 'f32[24,256]{1,0:T(8,128)}', space=vmem, size = 0x6000, scoped, tag = 'scratch operand']
  %s0 = inlined_call_operand.vmem [shape: f32[2,8,256], index: 0, kind: input, shape index: {}]
  %s1 = inlined_call_operand.vmem [shape: bf16[24,8], index: 1, kind: input, shape index: {}]
  %s2 = inlined_call_operand.vmem [shape: f32[24,1], index: 2, kind: input, shape index: {}]
  %s3 = inlined_call_operand.vmem [shape: f32[24,1], index: 3, kind: input, shape index: {}]
  %s4 = inlined_call_operand.vmem [shape: f32[24,1], index: 4, kind: input, shape index: {}]
  %s5 = inlined_call_operand.vmem [shape: f32[6,24], index: 5, kind: input, shape index: {}]
  %s6 = inlined_call_operand.vmem [shape: f32[6,1], index: 6, kind: input, shape index: {}]
  %s7 = inlined_call_operand.vmem [shape: f32[24,6], index: 7, kind: input, shape index: {}]
  %s8 = inlined_call_operand.vmem [shape: f32[24,1], index: 8, kind: input, shape index: {}]
  %s9 = inlined_call_operand.vmem [shape: bf16[8,24], index: 9, kind: input, shape index: {}]
  %s10 = inlined_call_operand.vmem [shape: f32[8,1], index: 10, kind: input, shape index: {}]
  %s11 = inlined_call_operand.vmem [shape: f32[2,8,256], index: 11, kind: output, shape index: {}]
  %s12 = sld [smem:[#allocation0]]
  $region77: #{up_inner_forward.1} parent=0
    _
  %s14 = ssub.s32 1, %s12
  %s15 = scalar_select 0, %s14, %s12
  loop: start=0, step=1, limit=4
  $region2: #{up_inner_forward.1} parent=0 // loop_pre_header
    _
  $region3: #{up_inner_forward.1} parent=0 // loop_header
    %s17 = sphi 0, %s21
    %p18 = scmp.ge.s32.totalorder %s17, 4
    %s27 = sphi 0, %s29
    %s30 = sphi 0, %s27
    %s31 = sphi 0, %s30
    %s47 = sphi 0, %s31
    %s51 = sphi 0, %s51
    %s53 = sphi 0, %s51
    %s54 = sphi 0, %s53
    %s68 = sphi 0, %s54
    %s72 = sphi 0, %s72
    %s74 = sphi 0, %s72
    %s75 = sphi 0, %s74
    %s89 = sphi 0, %s75
    %s93 = sphi 0, %s93
    %s95 = sphi 0, %s93
    %s96 = sphi 0, %s95
    %s110 = sphi 0, %s96
    %s114 = sphi 0, %s114
    %s116 = sphi 0, %s114
    %s117 = sphi 0, %s116
    %s131 = sphi 0, %s117
    %s135 = sphi 0, %s135
    %s137 = sphi 0, %s135
    %s138 = sphi 0, %s137
    %s152 = sphi 0, %s138
    %s156 = sphi 0, %s156
    %s158 = sphi 0, %s156
    %s159 = sphi 0, %s158
    %s173 = sphi 0, %s159
    %s177 = sphi 0, %s177
    %s179 = sphi 0, %s177
    %s180 = sphi 0, %s179
    %s194 = sphi 0, %s180
    %s198 = sphi 0, %s198
    %s200 = sphi 0, %s198
    %s201 = sphi 0, %s200
    %s215 = sphi 0, %s201
    %s219 = sphi 0, %s219
    %s221 = sphi 0, %s219
    %s222 = sphi 0, %s221
    %s236 = sphi 0, %s222
    %s240 = sphi 0, %s240
    %s242 = sphi 0, %s240
    %s243 = sphi 0, %s242
    %s257 = sphi 0, %s243
    %s263 = sphi 0, %s265
    %s266 = sphi 0, %s263
    %s267 = sphi 0, %s266
    %s283 = sphi 0, %s267
  $region4: #{up_inner_forward.1} parent=0 // loop_header_branch
    %20 = sbr.rel (%p18) target = $region8
  $region5: #{up_inner_forward.1} parent=0 // loop_body
    %s22 = ssub.s32 %s17, 1
    %s23 = ssub.s32 %s17, 2
    %s24 = sadd.s32 %s17, 1
    %s25 = ssub.s32 %s17, %s24
    %p26 = scmp.eq.s32.totalorder %s25, 0
    %s28 = sadd.s32 %s27, 1
    %s29 = scalar_select %p26, %s27, %s28
    %p32 = pneg %p26
    %p33 = scmp.eq.s32.totalorder %s17, 1
    %p34 = por %p32, %p33
    %p35 = scmp.ne.s32.totalorder %s27, %s30
    %p36 = scmp.eq.s32.totalorder %s17, 0
    %p37 = por %p35, %p36
    %p38 = scmp.ne.s32.totalorder %s27, %s30
    %p39 = scmp.eq.s32.totalorder %s22, 1
    %p40 = por %p38, %p39
    %p41 = scmp.ne.s32.totalorder %s30, %s31
    %p42 = scmp.eq.s32.totalorder %s22, 0
    %p43 = por %p41, %p42
    %p44 = scmp.ne.s32.totalorder %s30, %s31
    %p45 = scmp.eq.s32.totalorder %s23, 1
    %p46 = por %p44, %p45
    %p48 = scmp.ne.s32.totalorder %s31, %s47
    %p49 = scmp.eq.s32.totalorder %s23, 0
    %p50 = por %p48, %p49
    %s52 = sadd.s32 %s51, 1
    %p55 = scmp.eq.s32.totalorder %s17, 1
    %p56 = scmp.ne.s32.totalorder %s51, %s53
    %p57 = scmp.eq.s32.totalorder %s17, 0
    %p58 = por %p56, %p57
    %p59 = scmp.ne.s32.totalorder %s51, %s53
    %p60 = scmp.eq.s32.totalorder %s22, 1
    %p61 = por %p59, %p60
    %p62 = scmp.ne.s32.totalorder %s53, %s54
    %p63 = scmp.eq.s32.totalorder %s22, 0
    %p64 = por %p62, %p63
    %p65 = scmp.ne.s32.totalorder %s53, %s54
    %p66 = scmp.eq.s32.totalorder %s23, 1
    %p67 = por %p65, %p66
    %p69 = scmp.ne.s32.totalorder %s54, %s68
    %p70 = scmp.eq.s32.totalorder %s23, 0
    %p71 = por %p69, %p70
    %s73 = sadd.s32 %s72, 1
    %p76 = scmp.eq.s32.totalorder %s17, 1
    %p77 = scmp.ne.s32.totalorder %s72, %s74
    %p78 = scmp.eq.s32.totalorder %s17, 0
    %p79 = por %p77, %p78
    %p80 = scmp.ne.s32.totalorder %s72, %s74
    %p81 = scmp.eq.s32.totalorder %s22, 1
    %p82 = por %p80, %p81
    %p83 = scmp.ne.s32.totalorder %s74, %s75
    %p84 = scmp.eq.s32.totalorder %s22, 0
    %p85 = por %p83, %p84
    %p86 = scmp.ne.s32.totalorder %s74, %s75
    %p87 = scmp.eq.s32.totalorder %s23, 1
    %p88 = por %p86, %p87
    %p90 = scmp.ne.s32.totalorder %s75, %s89
    %p91 = scmp.eq.s32.totalorder %s23, 0
    %p92 = por %p90, %p91
    %s94 = sadd.s32 %s93, 1
    %p97 = scmp.eq.s32.totalorder %s17, 1
    %p98 = scmp.ne.s32.totalorder %s93, %s95
    %p99 = scmp.eq.s32.totalorder %s17, 0
    %p100 = por %p98, %p99
    %p101 = scmp.ne.s32.totalorder %s93, %s95
    %p102 = scmp.eq.s32.totalorder %s22, 1
    %p103 = por %p101, %p102
    %p104 = scmp.ne.s32.totalorder %s95, %s96
    %p105 = scmp.eq.s32.totalorder %s22, 0
    %p106 = por %p104, %p105
    %p107 = scmp.ne.s32.totalorder %s95, %s96
    %p108 = scmp.eq.s32.totalorder %s23, 1
    %p109 = por %p107, %p108
    %p111 = scmp.ne.s32.totalorder %s96, %s110
    %p112 = scmp.eq.s32.totalorder %s23, 0
    %p113 = por %p111, %p112
    %s115 = sadd.s32 %s114, 1
    %p118 = scmp.eq.s32.totalorder %s17, 1
    %p119 = scmp.ne.s32.totalorder %s114, %s116
    %p120 = scmp.eq.s32.totalorder %s17, 0
    %p121 = por %p119, %p120
    %p122 = scmp.ne.s32.totalorder %s114, %s116
    %p123 = scmp.eq.s32.totalorder %s22, 1
    %p124 = por %p122, %p123
    %p125 = scmp.ne.s32.totalorder %s116, %s117
    %p126 = scmp.eq.s32.totalorder %s22, 0
    %p127 = por %p125, %p126
    %p128 = scmp.ne.s32.totalorder %s116, %s117
    %p129 = scmp.eq.s32.totalorder %s23, 1
    %p130 = por %p128, %p129
    %p132 = scmp.ne.s32.totalorder %s117, %s131
    %p133 = scmp.eq.s32.totalorder %s23, 0
    %p134 = por %p132, %p133
    %s136 = sadd.s32 %s135, 1
    %p139 = scmp.eq.s32.totalorder %s17, 1
    %p140 = scmp.ne.s32.totalorder %s135, %s137
    %p141 = scmp.eq.s32.totalorder %s17, 0
    %p142 = por %p140, %p141
    %p143 = scmp.ne.s32.totalorder %s135, %s137
    %p144 = scmp.eq.s32.totalorder %s22, 1
    %p145 = por %p143, %p144
    %p146 = scmp.ne.s32.totalorder %s137, %s138
    %p147 = scmp.eq.s32.totalorder %s22, 0
    %p148 = por %p146, %p147
    %p149 = scmp.ne.s32.totalorder %s137, %s138
    %p150 = scmp.eq.s32.totalorder %s23, 1
    %p151 = por %p149, %p150
    %p153 = scmp.ne.s32.totalorder %s138, %s152
    %p154 = scmp.eq.s32.totalorder %s23, 0
    %p155 = por %p153, %p154
    %s157 = sadd.s32 %s156, 1
    %p160 = scmp.eq.s32.totalorder %s17, 1
    %p161 = scmp.ne.s32.totalorder %s156, %s158
    %p162 = scmp.eq.s32.totalorder %s17, 0
    %p163 = por %p161, %p162
    %p164 = scmp.ne.s32.totalorder %s156, %s158
    %p165 = scmp.eq.s32.totalorder %s22, 1
    %p166 = por %p164, %p165
    %p167 = scmp.ne.s32.totalorder %s158, %s159
    %p168 = scmp.eq.s32.totalorder %s22, 0
    %p169 = por %p167, %p168
    %p170 = scmp.ne.s32.totalorder %s158, %s159
    %p171 = scmp.eq.s32.totalorder %s23, 1
    %p172 = por %p170, %p171
    %p174 = scmp.ne.s32.totalorder %s159, %s173
    %p175 = scmp.eq.s32.totalorder %s23, 0
    %p176 = por %p174, %p175
    %s178 = sadd.s32 %s177, 1
    %p181 = scmp.eq.s32.totalorder %s17, 1
    %p182 = scmp.ne.s32.totalorder %s177, %s179
    %p183 = scmp.eq.s32.totalorder %s17, 0
    %p184 = por %p182, %p183
    %p185 = scmp.ne.s32.totalorder %s177, %s179
    %p186 = scmp.eq.s32.totalorder %s22, 1
    %p187 = por %p185, %p186
    %p188 = scmp.ne.s32.totalorder %s179, %s180
    %p189 = scmp.eq.s32.totalorder %s22, 0
    %p190 = por %p188, %p189
    %p191 = scmp.ne.s32.totalorder %s179, %s180
    %p192 = scmp.eq.s32.totalorder %s23, 1
    %p193 = por %p191, %p192
    %p195 = scmp.ne.s32.totalorder %s180, %s194
    %p196 = scmp.eq.s32.totalorder %s23, 0
    %p197 = por %p195, %p196
    %s199 = sadd.s32 %s198, 1
    %p202 = scmp.eq.s32.totalorder %s17, 1
    %p203 = scmp.ne.s32.totalorder %s198, %s200
    %p204 = scmp.eq.s32.totalorder %s17, 0
    %p205 = por %p203, %p204
    %p206 = scmp.ne.s32.totalorder %s198, %s200
    %p207 = scmp.eq.s32.totalorder %s22, 1
    %p208 = por %p206, %p207
    %p209 = scmp.ne.s32.totalorder %s200, %s201
    %p210 = scmp.eq.s32.totalorder %s22, 0
    %p211 = por %p209, %p210
    %p212 = scmp.ne.s32.totalorder %s200, %s201
    %p213 = scmp.eq.s32.totalorder %s23, 1
    %p214 = por %p212, %p213
    %p216 = scmp.ne.s32.totalorder %s201, %s215
    %p217 = scmp.eq.s32.totalorder %s23, 0
    %p218 = por %p216, %p217
    %s220 = sadd.s32 %s219, 1
    %p223 = scmp.eq.s32.totalorder %s17, 1
    %p224 = scmp.ne.s32.totalorder %s219, %s221
    %p225 = scmp.eq.s32.totalorder %s17, 0
    %p226 = por %p224, %p225
    %p227 = scmp.ne.s32.totalorder %s219, %s221
    %p228 = scmp.eq.s32.totalorder %s22, 1
    %p229 = por %p227, %p228
    %p230 = scmp.ne.s32.totalorder %s221, %s222
    %p231 = scmp.eq.s32.totalorder %s22, 0
    %p232 = por %p230, %p231
    %p233 = scmp.ne.s32.totalorder %s221, %s222
    %p234 = scmp.eq.s32.totalorder %s23, 1
    %p235 = por %p233, %p234
    %p237 = scmp.ne.s32.totalorder %s222, %s236
    %p238 = scmp.eq.s32.totalorder %s23, 0
    %p239 = por %p237, %p238
    %s241 = sadd.s32 %s240, 1
    %p244 = scmp.eq.s32.totalorder %s17, 1
    %p245 = scmp.ne.s32.totalorder %s240, %s242
    %p246 = scmp.eq.s32.totalorder %s17, 0
    %p247 = por %p245, %p246
    %p248 = scmp.ne.s32.totalorder %s240, %s242
    %p249 = scmp.eq.s32.totalorder %s22, 1
    %p250 = por %p248, %p249
    %p251 = scmp.ne.s32.totalorder %s242, %s243
    %p252 = scmp.eq.s32.totalorder %s22, 0
    %p253 = por %p251, %p252
    %p254 = scmp.ne.s32.totalorder %s242, %s243
    %p255 = scmp.eq.s32.totalorder %s23, 1
    %p256 = por %p254, %p255
    %p258 = scmp.ne.s32.totalorder %s243, %s257
    %p259 = scmp.eq.s32.totalorder %s23, 0
    %p260 = por %p258, %p259
    %s261 = ssub.s32 %s17, %s24
    %p262 = scmp.eq.s32.totalorder %s261, 0
    %s264 = sadd.s32 %s263, 1
    %s265 = scalar_select %p262, %s263, %s264
    %p268 = pneg %p262
    %p269 = scmp.eq.s32.totalorder %s17, 1
    %p270 = por %p268, %p269
    %p271 = scmp.ne.s32.totalorder %s263, %s266
    %p272 = scmp.eq.s32.totalorder %s17, 0
    %p273 = por %p271, %p272
    %p274 = scmp.ne.s32.totalorder %s263, %s266
    %p275 = scmp.eq.s32.totalorder %s22, 1
    %p276 = por %p274, %p275
    %p277 = scmp.ne.s32.totalorder %s266, %s267
    %p278 = scmp.eq.s32.totalorder %s22, 0
    %p279 = por %p277, %p278
    %p280 = scmp.ne.s32.totalorder %s266, %s267
    %p281 = scmp.eq.s32.totalorder %s23, 1
    %p282 = por %p280, %p281
    %p284 = scmp.ne.s32.totalorder %s267, %s283
    %p285 = scmp.eq.s32.totalorder %s23, 0
    %p286 = por %p284, %p285
    %p287 = scmp.le.s32.totalorder 1, %s17
    %p288 = scmp.lt.s32.totalorder %s17, 3
    %p289 = pnand %p287, %p288
    %p290 = pneg %p289
    // Predicated region
    $region9: #{up_inner_forward.1} parent=5 // pred_check
      _
    $region10: #{up_inner_forward.1} parent=5 // pred_check_branch
      %292 = sbr.rel (%p289) target = $region12
    $region11: #{up_inner_forward.1} parent=5 // pred_region
      %s293 = ssub.s32 %s17, 1
      // Predicated region
      $region13: #{up_inner_forward.1} parent=11 // pred_check
        %p294 = pneg %p64
      $region14: #{up_inner_forward.1} parent=11 // pred_check_branch
        %296 = sbr.rel (%p294) target = $region16
      $region15: #{up_inner_forward.1} parent=11 // pred_region
        _
      $region16: #{up_inner_forward.1} parent=11 // pred_fallthru
        _
      // Predicated region
      $region17: #{up_inner_forward.1} parent=11 // pred_check
        %p297 = pneg %p85
      $region18: #{up_inner_forward.1} parent=11 // pred_check_branch
        %299 = sbr.rel (%p297) target = $region20
      $region19: #{up_inner_forward.1} parent=11 // pred_region
        _
      $region20: #{up_inner_forward.1} parent=11 // pred_fallthru
        _
      // Predicated region
      $region21: #{up_inner_forward.1} parent=11 // pred_check
        %p300 = pneg %p106
      $region22: #{up_inner_forward.1} parent=11 // pred_check_branch
        %302 = sbr.rel (%p300) target = $region24
      $region23: #{up_inner_forward.1} parent=11 // pred_region
        _
      $region24: #{up_inner_forward.1} parent=11 // pred_fallthru
        _
      // Predicated region
      $region25: #{up_inner_forward.1} parent=11 // pred_check
        %p303 = pneg %p127
      $region26: #{up_inner_forward.1} parent=11 // pred_check_branch
        %305 = sbr.rel (%p303) target = $region28
      $region27: #{up_inner_forward.1} parent=11 // pred_region
        _
      $region28: #{up_inner_forward.1} parent=11 // pred_fallthru
        _
      // Predicated region
      $region29: #{up_inner_forward.1} parent=11 // pred_check
        %p306 = pneg %p148
      $region30: #{up_inner_forward.1} parent=11 // pred_check_branch
        %308 = sbr.rel (%p306) target = $region32
      $region31: #{up_inner_forward.1} parent=11 // pred_region
        _
      $region32: #{up_inner_forward.1} parent=11 // pred_fallthru
        _
      // Predicated region
      $region33: #{up_inner_forward.1} parent=11 // pred_check
        %p309 = pneg %p169
      $region34: #{up_inner_forward.1} parent=11 // pred_check_branch
        %311 = sbr.rel (%p309) target = $region36
      $region35: #{up_inner_forward.1} parent=11 // pred_region
        _
      $region36: #{up_inner_forward.1} parent=11 // pred_fallthru
        _
      // Predicated region
      $region37: #{up_inner_forward.1} parent=11 // pred_check
        %p312 = pneg %p190
      $region38: #{up_inner_forward.1} parent=11 // pred_check_branch
        %314 = sbr.rel (%p312) target = $region40
      $region39: #{up_inner_forward.1} parent=11 // pred_region
        _
      $region40: #{up_inner_forward.1} parent=11 // pred_fallthru
        _
      // Predicated region
      $region41: #{up_inner_forward.1} parent=11 // pred_check
        %p315 = pneg %p211
      $region42: #{up_inner_forward.1} parent=11 // pred_check_branch
        %317 = sbr.rel (%p315) target = $region44
      $region43: #{up_inner_forward.1} parent=11 // pred_region
        _
      $region44: #{up_inner_forward.1} parent=11 // pred_fallthru
        _
      // Predicated region
      $region45: #{up_inner_forward.1} parent=11 // pred_check
        %p318 = pneg %p232
      $region46: #{up_inner_forward.1} parent=11 // pred_check_branch
        %320 = sbr.rel (%p318) target = $region48
      $region47: #{up_inner_forward.1} parent=11 // pred_region
        _
      $region48: #{up_inner_forward.1} parent=11 // pred_fallthru
        _
      // Predicated region
      $region49: #{up_inner_forward.1} parent=11 // pred_check
        %p321 = pneg %p253
      $region50: #{up_inner_forward.1} parent=11 // pred_check_branch
        %323 = sbr.rel (%p321) target = $region52
      $region51: #{up_inner_forward.1} parent=11 // pred_region
        _
      $region52: #{up_inner_forward.1} parent=11 // pred_fallthru
        _
    $region12: #{up_inner_forward.1} parent=5 // pred_fallthru
      _
    %p324 = scmp.lt.s32.totalorder %s17, 2
    // Predicated region
    $region53: #{up_inner_forward.1} parent=5 // pred_check
      %p325 = pneg %p324
    $region54: #{up_inner_forward.1} parent=5 // pred_check_branch
      %327 = sbr.rel (%p325) target = $region56
    $region55: #{up_inner_forward.1} parent=5 // pred_region
      // Predicated region
      $region57: #{up_inner_forward.1} parent=55 // pred_check
        %p328 = pneg %p37
      $region58: #{up_inner_forward.1} parent=55 // pred_check_branch
        %330 = sbr.rel (%p328) target = $region60
      $region59: #{up_inner_forward.1} parent=55 // pred_region
        %p331 = scmp.lt.s32.totalorder %s17, 1
        %s332 = scalar_select %p331, %s17, 1
        %s333 = smul.addr %s332, 2
        %s334 = smul.addr %s333, 8
        %s335 = scalar_lea.vmem %s0, %s334
      $region60: #{up_inner_forward.1} parent=55 // pred_fallthru
        _
    $region56: #{up_inner_forward.1} parent=5 // pred_fallthru
      _
    %p336 = scmp.le.s32.totalorder 1, %s17
    %p337 = scmp.lt.s32.totalorder %s17, 3
    %p338 = pnand %p336, %p337
    %p339 = pneg %p338
    // Predicated region
    $region61: #{up_inner_forward.1} parent=5 // pred_check
      _
    $region62: #{up_inner_forward.1} parent=5 // pred_check_branch
      %341 = sbr.rel (%p338) target = $region64
    $region63: #{up_inner_forward.1} parent=5 // pred_region
      %s342 = ssub.s32 %s17, 1
      %p343 = scmp.lt.s32.totalorder %s22, 1
      %s344 = scalar_select %p343, %s22, 1
      %s345 = smul.addr %s344, 2
      %s346 = smul.addr %s345, 8
      %s347 = scalar_lea.vmem %s0, %s346
      %p348 = pneg %p43
      %p349 = pneg %p40
      %p350 = pneg %p64
      %p351 = pneg %p61
      %p352 = pneg %p85
      %p353 = pneg %p82
      %p354 = pneg %p106
      %p355 = pneg %p103
      %p356 = pneg %p127
      %p357 = pneg %p124
      %p358 = pneg %p148
      %p359 = pneg %p145
      %p360 = pneg %p169
      %p361 = pneg %p166
      %p362 = pneg %p190
      %p363 = pneg %p187
      %p364 = pneg %p211
      %p365 = pneg %p208
      %p366 = pneg %p232
      %p367 = pneg %p229
      %p368 = pneg %p253
      %p369 = pneg %p250
      %p370 = pneg %p279
      %p371 = pneg %p276
      %p372 = scmp.lt.s32.totalorder %s22, 1
      %s373 = scalar_select %p372, %s22, 1
      %s374 = smul.addr %s373, 2
      %s375 = smul.addr %s374, 8
      %s376 = scalar_lea.vmem %s11, %s375
      %p377 = scmp.lt.s32.totalorder %s22, 1
      %s378 = scalar_select %p377, %s22, 1
      %s379 = smul.addr %s378, 2
      %s380 = smul.addr %s379, 8
      %s381 = scalar_lea.vmem %s0, %s380
      %p382 = scmp.lt.s32.totalorder %s22, 1
      %s383 = scalar_select %p382, %s22, 1
      %s384 = smul.addr %s383, 2
      %s385 = smul.addr %s384, 8
      %s386 = scalar_lea.vmem %s11, %s385
      %v388 = vld [vmem:[%s381] sm:$0xff]
      %v389 = vld [vmem:[%s381 + $0x8] sm:$0xff]
      %v390 = vld [vmem:[%s1] sm:$0xf]
      %v391 = vld [vmem:[%s1 + $0x4] sm:$0xf]
      %v392 = vld [vmem:[%s1 + $0x8] sm:$0xf]
      %v393 = vpack.c.bf16 %v388, %v388
      %v394 = vpack.c.bf16 %v389, %v389
      %v395 = vld [vmem:[%s2] sm:$0xff]
      %v396 = vld [vmem:[%s2 + $0x8] sm:$0xff]
      %v397 = vld [vmem:[%s2 + $0x10] sm:$0xff]
      %399 = vset.pattern.permute.xlu0 0
      %400 = vperm.xlu0 %399, %v395
      %v401 = vpop.permute.xlu0 %400
      %404 = vset.pattern.permute.xlu0 0
      %405 = vperm.xlu0 %404, %v396
      %v406 = vpop.permute.xlu0 %405
      %409 = vset.pattern.permute.xlu0 0
      %410 = vperm.xlu0 %409, %v397
      %v411 = vpop.permute.xlu0 %410
      %v416 = vunpack.c.l.b16 %v390
      %v417 = vunpack.c.l.b16 %v391
      %v418 = vunpack.c.l.b16 %v392
      %v419 = vpack.c.b16 %v417, %v416
      %v420 = vpack.c.b16 %v418, %v418
      %vm421 = vcmask 64512
      %v423 = vsel %vm421, %v419, 0
      %v426 = vsel %vm421, %v420, 0
      %vm428 = vcmask 1043456
      %v430 = vsel %vm428, %v393, 0
      %v433 = vsel %vm428, %v394, 0
      %435 = vmatprep.subr.bf16.mxu0 0
      %436 = vmatpush1.bf16.msra.mxu0 0
      %437 = vmatprep.subr.bf16.mxu0 0
      %438 = vmatpush1.bf16.msra.mxu0 0
      %439 = vmatprep.subr.bf16.mxu0 0
      %440 = vmatpush1.bf16.msra.mxu0 0
      %441 = vmatprep.subr.bf16.mxu0 0
      %442 = vmatpush1.bf16.msra.mxu0 0
      %443 = vmatprep.subr.bf16.mxu0 0
      %444 = vmatpush1.bf16.msra.mxu0 0
      %445 = vmatprep.subr.bf16.mxu0 0
      %446 = vmatpush1.bf16.msra.mxu0 0
      %447 = vmatprep.subr.bf16.mxu0 0
      %448 = vmatpush1.bf16.msra.mxu0 0
      %449 = vmatprep.subr.bf16.mxu0 %v433
      %450 = vmatpush1.bf16.msra.mxu0 %v430
      %451 = vmatprep.subr.bf16.mxu0 0
      %452 = vmatpush2.bf16.msra.mxu0 0
      %453 = vmatprep.subr.bf16.mxu0 0
      %454 = vmatpush2.bf16.msra.mxu0 0
      %455 = vmatprep.subr.bf16.mxu0 0
      %456 = vmatpush2.bf16.msra.mxu0 0
      %457 = vmatprep.subr.bf16.mxu0 0
      %458 = vmatpush2.bf16.msra.mxu0 0
      %459 = vmatprep.subr.bf16.mxu0 0
      %460 = vmatpush2.bf16.msra.mxu0 0
      %461 = vmatprep.subr.bf16.mxu0 0
      %462 = vmatpush2.bf16.msra.mxu0 0
      %463 = vmatprep.subr.bf16.mxu0 0
      %464 = vmatpush2.bf16.msra.mxu0 0
      %465 = vmatprep.subr.bf16.mxu0 0
      %466 = vmatpush2.bf16.msra.mxu0 0
      %467 = vmatprep.mubr.bf16.mxu0 0
      %468 = vmatmul.mubr.bf16.gmra.mxu0 %v423
      %v469 = vpop.f32.mrf.mxu0
      %v470 = vadd.f32 %v401, %v469
      %v471 = vpop.f32.mrf.mxu0
      %v472 = vadd.f32 %v401, %v471
      %v473 = vpop.f32.mrf.mxu0
      %v474 = vadd.f32 %v406, %v473
      %v475 = vpop.f32.mrf.mxu0
      %v476 = vadd.f32 %v406, %v475
      %477 = vmatprep.mubr.bf16.mxu0 0
      %478 = vmatmul.mubr.bf16.gmra.mxu0 %v426
      %v479 = vpop.f32.mrf.mxu0
      %v480 = vadd.f32 %v411, %v479
      %v481 = vpop.f32.mrf.mxu0
      %v482 = vadd.f32 %v411, %v481
      %v483 = vpop.f32.mrf.mxu0
      %v484 = vpop.f32.mrf.mxu0
      %485 = vdwg.mxu0
      %v486 = vadd.f32 %v470, 3.0
      %v487 = vadd.f32 %v472, 3.0
      %v488 = vadd.f32 %v474, 3.0
      %v489 = vadd.f32 %v476, 3.0
      %v490 = vadd.f32 %v480, 3.0
      %v491 = vadd.f32 %v482, 3.0
      %v492 = vmax.f32 %v486, 0.0
      %v493 = vmax.f32 %v487, 0.0
      %v494 = vmax.f32 %v488, 0.0
      %v495 = vmax.f32 %v489, 0.0
      %v496 = vmax.f32 %v490, 0.0
      %v497 = vmax.f32 %v491, 0.0
      %v498 = vmin.f32 %v492, 6.0
      %v499 = vmin.f32 %v493, 6.0
      %v500 = vmin.f32 %v494, 6.0
      %v501 = vmin.f32 %v495, 6.0
      %v502 = vmin.f32 %v496, 6.0
      %v503 = vmin.f32 %v497, 6.0
      %v504 = vmul.f32 %v470, %v498
      %v505 = vmul.f32 %v472, %v499
      %v506 = vmul.f32 %v474, %v500
      %v507 = vmul.f32 %v476, %v501
      %v508 = vmul.f32 %v480, %v502
      %v509 = vmul.f32 %v482, %v503
      %v510 = vmul.f32 %v504, 0.16666667
      %v511 = vmul.f32 %v505, 0.16666667
      %v512 = vmul.f32 %v506, 0.16666667
      %v513 = vmul.f32 %v507, 0.16666667
      %v514 = vmul.f32 %v508, 0.16666667
      %v515 = vmul.f32 %v509, 0.16666667
      %v516 = vld [vmem:[%s3] sm:$0xff]
      %v517 = vld [vmem:[%s3 + $0x8] sm:$0xff]
      %v518 = vld [vmem:[%s3 + $0x10] sm:$0xff]
      %520 = vset.pattern.permute.xlu0 0
      %521 = vperm.xlu0 %520, %v516
      %v522 = vpop.permute.xlu0 %521
      %525 = vset.pattern.permute.xlu0 0
      %526 = vperm.xlu0 %525, %v517
      %v527 = vpop.permute.xlu0 %526
      %530 = vset.pattern.permute.xlu0 0
      %531 = vperm.xlu0 %530, %v518
      %v532 = vpop.permute.xlu0 %531
      %v534 = vmul.f32 %v510, %v522
      %v535 = vmul.f32 %v511, %v522
      %v536 = vmul.f32 %v512, %v527
      %v537 = vmul.f32 %v513, %v527
      %v538 = vmul.f32 %v514, %v532
      %v539 = vmul.f32 %v515, %v532
      %v540 = vld [vmem:[%s4] sm:$0xff]
      %v541 = vld [vmem:[%s4 + $0x8] sm:$0xff]
      %v542 = vld [vmem:[%s4 + $0x10] sm:$0xff]
      %544 = vset.pattern.permute.xlu0 0
      %545 = vperm.xlu0 %544, %v540
      %v546 = vpop.permute.xlu0 %545
      %549 = vset.pattern.permute.xlu0 0
      %550 = vperm.xlu0 %549, %v541
      %v551 = vpop.permute.xlu0 %550
      %554 = vset.pattern.permute.xlu0 0
      %555 = vperm.xlu0 %554, %v542
      %v556 = vpop.permute.xlu0 %555
      %v558 = vadd.f32 %v534, %v546
      %v559 = vadd.f32 %v535, %v546
      %v560 = vadd.f32 %v536, %v551
      %v561 = vadd.f32 %v537, %v551
      %v562 = vadd.f32 %v538, %v556
      %v563 = vadd.f32 %v539, %v556
      %564 = vst [vmem:[#allocation2] sm:$0xff] %v558
      %565 = vst [vmem:[#allocation2 + $0x8] sm:$0xff] %v559
      %566 = vst [vmem:[#allocation2 + $0x10] sm:$0xff] %v560
      %567 = vst [vmem:[#allocation2 + $0x18] sm:$0xff] %v561
      %568 = vst [vmem:[#allocation2 + $0x20] sm:$0xff] %v562
      %569 = vst [vmem:[#allocation2 + $0x28] sm:$0xff] %v563
      %v570 = vadd.f32 %v558, %v559
      %571 = vadd.xlane.f32.xlu0 %v570
      %v572 = vpop.xlane.xlu0 %571
      %v573 = vadd.f32 %v560, %v561
      %574 = vadd.xlane.f32.xlu0 %v573
      %v575 = vpop.xlane.xlu0 %574
      %v576 = vadd.f32 %v562, %v563
      %577 = vadd.xlane.f32.xlu0 %v576
      %v578 = vpop.xlane.xlu0 %577
      %v579 = vmul.f32 %v572, 0.00390625
      %v580 = vmul.f32 %v575, 0.00390625
      %v581 = vmul.f32 %v578, 0.00390625
      %v582 = vld [vmem:[%s5] sm:$0x3f]
      %v583 = vld [vmem:[%s6] sm:$0x3f]
      %vm584 = vcmask 195584
      %v586 = vsel %vm584, %v582, 0
      %588 = vmatprep.subr.mxu0 0.0
      %589 = vmatpush1.msra.mxu0 0.0
      %590 = vmatprep.subr.mxu0 0.0
      %591 = vmatpush1.msra.mxu0 0.0
      %592 = vmatprep.subr.mxu0 0.0
      %593 = vmatpush1.msra.mxu0 0.0
      %594 = vmatprep.subr.mxu0 0.0
      %595 = vmatpush1.msra.mxu0 0.0
      %596 = vmatprep.subr.mxu0 0.0
      %597 = vmatpush1.msra.mxu0 0.0
      %598 = vmatprep.subr.mxu0 0.0
      %599 = vmatpush1.msra.mxu0 0.0
      %600 = vmatprep.subr.mxu0 0.0
      %601 = vmatpush1.msra.mxu0 0.0
      %602 = vmatprep.subr.mxu0 0.0
      %603 = vmatpush1.msra.mxu0 0.0
      %604 = vmatprep.subr.mxu0 0.0
      %605 = vmatpush1.msra.mxu0 0.0
      %606 = vmatprep.subr.mxu0 0.0
      %607 = vmatpush1.msra.mxu0 0.0
      %608 = vmatprep.subr.mxu0 0.0
      %609 = vmatpush1.msra.mxu0 0.0
      %610 = vmatprep.subr.mxu0 0.0
      %611 = vmatpush1.msra.mxu0 0.0
      %612 = vmatprep.subr.mxu0 0.0
      %613 = vmatpush1.msra.mxu0 0.0
      %614 = vmatprep.subr.mxu0 0.0
      %615 = vmatpush1.msra.mxu0 %v581
      %616 = vmatprep.subr.mxu0 0.0
      %617 = vmatpush1.msra.mxu0 %v580
      %618 = vmatprep.subr.mxu0 0.0
      %619 = vmatpush1.msra.mxu0 %v579
      %620 = vmatprep.subr.mxu0 0.0
      %621 = vmatpush2.msra.mxu0 0.0
      %622 = vmatprep.subr.mxu0 0.0
      %623 = vmatpush2.msra.mxu0 0.0
      %624 = vmatprep.subr.mxu0 0.0
      %625 = vmatpush2.msra.mxu0 0.0
      %626 = vmatprep.subr.mxu0 0.0
      %627 = vmatpush2.msra.mxu0 0.0
      %628 = vmatprep.subr.mxu0 0.0
      %629 = vmatpush2.msra.mxu0 0.0
      %630 = vmatprep.subr.mxu0 0.0
      %631 = vmatpush2.msra.mxu0 0.0
      %632 = vmatprep.subr.mxu0 0.0
      %633 = vmatpush2.msra.mxu0 0.0
      %634 = vmatprep.subr.mxu0 0.0
      %635 = vmatpush2.msra.mxu0 0.0
      %636 = vmatprep.subr.mxu0 0.0
      %637 = vmatpush2.msra.mxu0 0.0
      %638 = vmatprep.subr.mxu0 0.0
      %639 = vmatpush2.msra.mxu0 0.0
      %640 = vmatprep.subr.mxu0 0.0
      %641 = vmatpush2.msra.mxu0 0.0
      %642 = vmatprep.subr.mxu0 0.0
      %643 = vmatpush2.msra.mxu0 0.0
      %644 = vmatprep.subr.mxu0 0.0
      %645 = vmatpush2.msra.mxu0 0.0
      %646 = vmatprep.subr.mxu0 0.0
      %647 = vmatpush2.msra.mxu0 0.0
      %648 = vmatprep.subr.mxu0 0.0
      %649 = vmatpush2.msra.mxu0 0.0
      %650 = vmatprep.subr.mxu0 0.0
      %651 = vmatpush2.msra.mxu0 0.0
      %652 = vmatprep.mubr.f32.mxu0 0.0
      %653 = vmatmul.mubr.f32.gmra.mxu0 %v586
      %v654 = vpop.f32.mrf.mxu0
      %v655 = vadd.f32 %v583, %v654
      %v656 = vpop.f32.mrf.mxu0
      %657 = vdwg.mxu0
      %v658 = vmax.f32 %v655, 0.0
      %v659 = vld [vmem:[%s7] sm:$0xff]
      %v660 = vld [vmem:[%s7 + $0x8] sm:$0xff]
      %v661 = vld [vmem:[%s7 + $0x10] sm:$0xff]
      %v662 = vld [vmem:[%s8] sm:$0xff]
      %v663 = vld [vmem:[%s8 + $0x8] sm:$0xff]
      %v664 = vld [vmem:[%s8 + $0x10] sm:$0xff]
      %vm665 = vcmask 48128
      %v667 = vsel %vm665, %v659, 0
      %v670 = vsel %vm665, %v660, 0
      %v673 = vsel %vm665, %v661, 0
      %vm675 = vcmask 1045504
      %v677 = vsel %vm675, %v658, 0
      %679 = vmatprep.subr.mxu0 0.0
      %680 = vmatpush1.msra.mxu0 0.0
      %681 = vmatprep.subr.mxu0 0.0
      %682 = vmatpush1.msra.mxu0 0.0
      %683 = vmatprep.subr.mxu0 0.0
      %684 = vmatpush1.msra.mxu0 0.0
      %685 = vmatprep.subr.mxu0 0.0
      %686 = vmatpush1.msra.mxu0 0.0
      %687 = vmatprep.subr.mxu0 0.0
      %688 = vmatpush1.msra.mxu0 0.0
      %689 = vmatprep.subr.mxu0 0.0
      %690 = vmatpush1.msra.mxu0 0.0
      %691 = vmatprep.subr.mxu0 0.0
      %692 = vmatpush1.msra.mxu0 0.0
      %693 = vmatprep.subr.mxu0 0.0
      %694 = vmatpush1.msra.mxu0 0.0
      %695 = vmatprep.subr.mxu0 0.0
      %696 = vmatpush1.msra.mxu0 0.0
      %697 = vmatprep.subr.mxu0 0.0
      %698 = vmatpush1.msra.mxu0 0.0
      %699 = vmatprep.subr.mxu0 0.0
      %700 = vmatpush1.msra.mxu0 0.0
      %701 = vmatprep.subr.mxu0 0.0
      %702 = vmatpush1.msra.mxu0 0.0
      %703 = vmatprep.subr.mxu0 0.0
      %704 = vmatpush1.msra.mxu0 0.0
      %705 = vmatprep.subr.mxu0 0.0
      %706 = vmatpush1.msra.mxu0 0.0
      %707 = vmatprep.subr.mxu0 0.0
      %708 = vmatpush1.msra.mxu0 0.0
      %709 = vmatprep.subr.mxu0 0.0
      %710 = vmatpush1.msra.mxu0 %v677
      %711 = vmatprep.subr.mxu0 0.0
      %712 = vmatpush2.msra.mxu0 0.0
      %713 = vmatprep.subr.mxu0 0.0
      %714 = vmatpush2.msra.mxu0 0.0
      %715 = vmatprep.subr.mxu0 0.0
      %716 = vmatpush2.msra.mxu0 0.0
      %717 = vmatprep.subr.mxu0 0.0
      %718 = vmatpush2.msra.mxu0 0.0
      %719 = vmatprep.subr.mxu0 0.0
      %720 = vmatpush2.msra.mxu0 0.0
      %721 = vmatprep.subr.mxu0 0.0
      %722 = vmatpush2.msra.mxu0 0.0
      %723 = vmatprep.subr.mxu0 0.0
      %724 = vmatpush2.msra.mxu0 0.0
      %725 = vmatprep.subr.mxu0 0.0
      %726 = vmatpush2.msra.mxu0 0.0
      %727 = vmatprep.subr.mxu0 0.0
      %728 = vmatpush2.msra.mxu0 0.0
      %729 = vmatprep.subr.mxu0 0.0
      %730 = vmatpush2.msra.mxu0 0.0
      %731 = vmatprep.subr.mxu0 0.0
      %732 = vmatpush2.msra.mxu0 0.0
      %733 = vmatprep.subr.mxu0 0.0
      %734 = vmatpush2.msra.mxu0 0.0
      %735 = vmatprep.subr.mxu0 0.0
      %736 = vmatpush2.msra.mxu0 0.0
      %737 = vmatprep.subr.mxu0 0.0
      %738 = vmatpush2.msra.mxu0 0.0
      %739 = vmatprep.subr.mxu0 0.0
      %740 = vmatpush2.msra.mxu0 0.0
      %741 = vmatprep.subr.mxu0 0.0
      %742 = vmatpush2.msra.mxu0 0.0
      %743 = vmatprep.mubr.f32.mxu0 0.0
      %744 = vmatmul.mubr.f32.gmra.mxu0 %v667
      %v745 = vpop.f32.mrf.mxu0
      %v746 = vadd.f32 %v662, %v745
      %v747 = vpop.f32.mrf.mxu0
      %748 = vmatprep.mubr.f32.mxu0 0.0
      %749 = vmatmul.mubr.f32.gmra.mxu0 %v670
      %v750 = vpop.f32.mrf.mxu0
      %v751 = vadd.f32 %v663, %v750
      %v752 = vpop.f32.mrf.mxu0
      %753 = vmatprep.mubr.f32.mxu0 0.0
      %754 = vmatmul.mubr.f32.gmra.mxu0 %v673
      %v755 = vpop.f32.mrf.mxu0
      %v756 = vadd.f32 %v664, %v755
      %v757 = vpop.f32.mrf.mxu0
      %758 = vdwg.mxu0
      %v759 = vadd.f32 %v746, 3.0
      %v760 = vadd.f32 %v751, 3.0
      %v761 = vadd.f32 %v756, 3.0
      %v762 = vmax.f32 %v759, 0.0
      %v763 = vmax.f32 %v760, 0.0
      %v764 = vmax.f32 %v761, 0.0
      %v765 = vmin.f32 %v762, 6.0
      %v766 = vmin.f32 %v763, 6.0
      %v767 = vmin.f32 %v764, 6.0
      %v768 = vmul.f32 %v765, 0.16666667
      %v769 = vmul.f32 %v766, 0.16666667
      %v770 = vmul.f32 %v767, 0.16666667
      %v771 = vld [vmem:[#allocation2] sm:$0xff]
      %v772 = vld [vmem:[#allocation2 + $0x8] sm:$0xff]
      %v773 = vld [vmem:[#allocation2 + $0x10] sm:$0xff]
      %v774 = vld [vmem:[#allocation2 + $0x18] sm:$0xff]
      %v775 = vld [vmem:[#allocation2 + $0x20] sm:$0xff]
      %v776 = vld [vmem:[#allocation2 + $0x28] sm:$0xff]
      %778 = vset.pattern.permute.xlu0 0
      %779 = vperm.xlu0 %778, %v768
      %v780 = vpop.permute.xlu0 %779
      %783 = vset.pattern.permute.xlu0 0
      %784 = vperm.xlu0 %783, %v769
      %v785 = vpop.permute.xlu0 %784
      %788 = vset.pattern.permute.xlu0 0
      %789 = vperm.xlu0 %788, %v770
      %v790 = vpop.permute.xlu0 %789
      %v792 = vmul.f32 %v771, %v780
      %v793 = vmul.f32 %v772, %v780
      %v794 = vmul.f32 %v773, %v785
      %v795 = vmul.f32 %v774, %v785
      %v796 = vmul.f32 %v775, %v790
      %v797 = vmul.f32 %v776, %v790
      %v798 = vadd.f32 %v792, 3.0
      %v799 = vadd.f32 %v793, 3.0
      %v800 = vadd.f32 %v794, 3.0
      %v801 = vadd.f32 %v795, 3.0
      %v802 = vadd.f32 %v796, 3.0
      %v803 = vadd.f32 %v797, 3.0
      %v804 = vmax.f32 %v798, 0.0
      %v805 = vmax.f32 %v799, 0.0
      %v806 = vmax.f32 %v800, 0.0
      %v807 = vmax.f32 %v801, 0.0
      %v808 = vmax.f32 %v802, 0.0
      %v809 = vmax.f32 %v803, 0.0
      %v810 = vmin.f32 %v804, 6.0
      %v811 = vmin.f32 %v805, 6.0
      %v812 = vmin.f32 %v806, 6.0
      %v813 = vmin.f32 %v807, 6.0
      %v814 = vmin.f32 %v808, 6.0
      %v815 = vmin.f32 %v809, 6.0
      %v816 = vmul.f32 %v792, %v810
      %v817 = vmul.f32 %v793, %v811
      %v818 = vmul.f32 %v794, %v812
      %v819 = vmul.f32 %v795, %v813
      %v820 = vmul.f32 %v796, %v814
      %v821 = vmul.f32 %v797, %v815
      %v822 = vmul.f32 %v816, 0.16666667
      %v823 = vmul.f32 %v817, 0.16666667
      %v824 = vmul.f32 %v818, 0.16666667
      %v825 = vmul.f32 %v819, 0.16666667
      %v826 = vmul.f32 %v820, 0.16666667
      %v827 = vmul.f32 %v821, 0.16666667
      %v828 = vld [vmem:[%s9] sm:$0xf]
      %v829 = vpack.c.bf16 %v824, %v822
      %v830 = vpack.c.bf16 %v825, %v823
      %v831 = vpack.c.bf16 %v826, %v826
      %v832 = vpack.c.bf16 %v827, %v827
      %v833 = vld [vmem:[%s10] sm:$0xff]
      %835 = vset.pattern.permute.xlu0 0
      %836 = vperm.xlu0 %835, %v833
      %v837 = vpop.permute.xlu0 %836
      %v840 = vsel %vm584, %v828, 0
      %v843 = vsel %vm428, %v831, 0
      %v846 = vsel %vm428, %v832, 0
      %848 = vmatprep.subr.bf16.mxu0 0
      %849 = vmatpush1.bf16.msra.mxu0 0
      %850 = vmatprep.subr.bf16.mxu0 0
      %851 = vmatpush1.bf16.msra.mxu0 0
      %852 = vmatprep.subr.bf16.mxu0 0
      %853 = vmatpush1.bf16.msra.mxu0 0
      %854 = vmatprep.subr.bf16.mxu0 0
      %855 = vmatpush1.bf16.msra.mxu0 0
      %856 = vmatprep.subr.bf16.mxu0 0
      %857 = vmatpush1.bf16.msra.mxu0 0
      %858 = vmatprep.subr.bf16.mxu0 0
      %859 = vmatpush1.bf16.msra.mxu0 0
      %860 = vmatprep.subr.bf16.mxu0 %v846
      %861 = vmatpush1.bf16.msra.mxu0 %v843
      %862 = vmatprep.subr.bf16.mxu0 %v830
      %863 = vmatpush1.bf16.msra.mxu0 %v829
      %864 = vmatprep.subr.bf16.mxu0 0
      %865 = vmatpush2.bf16.msra.mxu0 0
      %866 = vmatprep.subr.bf16.mxu0 0
      %867 = vmatpush2.bf16.msra.mxu0 0
      %868 = vmatprep.subr.bf16.mxu0 0
      %869 = vmatpush2.bf16.msra.mxu0 0
      %870 = vmatprep.subr.bf16.mxu0 0
      %871 = vmatpush2.bf16.msra.mxu0 0
      %872 = vmatprep.subr.bf16.mxu0 0
      %873 = vmatpush2.bf16.msra.mxu0 0
      %874 = vmatprep.subr.bf16.mxu0 0
      %875 = vmatpush2.bf16.msra.mxu0 0
      %876 = vmatprep.subr.bf16.mxu0 0
      %877 = vmatpush2.bf16.msra.mxu0 0
      %878 = vmatprep.subr.bf16.mxu0 0
      %879 = vmatpush2.bf16.msra.mxu0 0
      %880 = vmatprep.mubr.bf16.mxu0 0
      %881 = vmatmul.mubr.bf16.gmra.mxu0 %v840
      %v882 = vpop.f32.mrf.mxu0
      %v883 = vadd.f32 %v837, %v882
      %v884 = vpop.f32.mrf.mxu0
      %v885 = vadd.f32 %v837, %v884
      %v886 = vpop.f32.mrf.mxu0
      %v887 = vpop.f32.mrf.mxu0
      %888 = vdwg.mxu0
      %v889 = vadd.f32 %v883, %v388
      %v890 = vadd.f32 %v885, %v389
      %891 = vst [vmem:[%s386] sm:$0xff] %v889
      %892 = vst [vmem:[%s386 + $0x8] sm:$0xff] %v890
      %p893 = scmp.lt.s32.totalorder %s22, 1
      %s894 = scalar_select %p893, %s22, 1
      %s895 = smul.addr %s894, 2
      %s896 = smul.addr %s895, 8
      %s897 = scalar_lea.vmem %s11, %s896
      // Predicated region
      $region65: #{up_inner_forward.1} parent=63 // pred_check
        %p898 = pneg %p276
      $region66: #{up_inner_forward.1} parent=63 // pred_check_branch
        %900 = sbr.rel (%p898) target = $region68
      $region67: #{up_inner_forward.1} parent=63 // pred_region
        _
      $region68: #{up_inner_forward.1} parent=63 // pred_fallthru
        _
    $region64: #{up_inner_forward.1} parent=5 // pred_fallthru
      _
    %p901 = scmp.le.s32.totalorder 2, %s17
    // Predicated region
    $region69: #{up_inner_forward.1} parent=5 // pred_check
      %p902 = pneg %p901
    $region70: #{up_inner_forward.1} parent=5 // pred_check_branch
      %904 = sbr.rel (%p902) target = $region72
    $region71: #{up_inner_forward.1} parent=5 // pred_region
      %s905 = ssub.s32 %s17, 2
      // Predicated region
      $region73: #{up_inner_forward.1} parent=71 // pred_check
        %p906 = pneg %p282
      $region74: #{up_inner_forward.1} parent=71 // pred_check_branch
        %908 = sbr.rel (%p906) target = $region76
      $region75: #{up_inner_forward.1} parent=71 // pred_region
        %p909 = scmp.lt.s32.totalorder %s23, 1
        %s910 = scalar_select %p909, %s23, 1
        %s911 = smul.addr %s910, 2
        %s912 = smul.addr %s911, 8
        %s913 = scalar_lea.vmem %s11, %s912
      $region76: #{up_inner_forward.1} parent=71 // pred_fallthru
        _
    $region72: #{up_inner_forward.1} parent=5 // pred_fallthru
      _
  $region6: #{up_inner_forward.1} parent=0 // loop_footer
    %s21 = sadd.s32 1, %s17
  $region7: #{up_inner_forward.1} parent=0 // loop_footer_branch
    %16 = sbr.rel target = $region3
  $region8: #{up_inner_forward.1} parent=0 // loop_exit
    _

</llo_original>
